<compile_context>
chip_gen: v7x
topology: tpu7x:2x2x1
jax: 0.10.0
libtpu: 0.0.40
codegen_flags: <defaults>
</compile_context>

<pallas_src>
import functools

import jax
import jax.numpy as jnp
from jax.experimental import pallas as pl
from jax.experimental.pallas import tpu as pltpu

LN_EPS = 1e-12      # BERT-style layer_norm_eps
SLAB_W = 128        # lane width of the fused operand / small slab (vreg lane count)
OUT_W = 128         # lane width of the single packed output slab
_N_VEC = 11         # number of packed (1, H) bias / LayerNorm vectors
VEC_PAD = 16        # vec rows padded to a sublane multiple; weight segments start here

# Row indices of the packed (1, H)-vector block (rows [0:_N_VEC] of the param slab).
_B_ASP, _W_ALN, _B_ALN = 0, 1, 2
_B_IMG, _W_CLN, _B_CLN = 3, 4, 5
_W_VLLN, _B_VLLN = 6, 7
_B_SP, _W_SLN, _B_SLN = 8, 9, 10


def _round_up(x, m):
    return (x + m - 1) // m * m


def _layer_norm(x, w, b, eps=LN_EPS):
    """BertLayerNorm: normalize over last axis, then scale/shift (rsqrt -> EUP)."""
    u = jnp.mean(x, axis=-1, keepdims=True)
    d = x - u
    s = jnp.mean(d * d, axis=-1, keepdims=True)
    return w * (d * jax.lax.rsqrt(s + eps)) + b


def _masked_softmax(scores, mask):
    """Returns (probs, masked_scores). Exact division (probs sum to 1)."""
    masked = jnp.where(mask > 0, scores, -1e9)
    m = jnp.max(masked, axis=-1, keepdims=True)
    e = jnp.exp(masked - m)
    return e / jnp.sum(e, axis=-1, keepdims=True), masked


def vlnbert_kernel(
    mask_off,        # static: lane offset of lang_mask inside the small slab
    # --- activations ---
    instr_ref,       # (B, L, H)
    cand_ref,        # (B, C, D_pad)  (zero-padded to a multiple of 8)
    small_ref,       # (B, SLAB_W)    action_feats at [H:H+angle], masks at [mask_off:...]
    # --- packed parameters ---
    p_ref,           # (VEC_PAD + SLAB_W + D_pad + SLAB_W, H) single param slab
    # --- output ---
    out_ref,         # (B, OUT_W)     state_proj at lanes [0:H], logit at lanes [H:H+C]
    # --- scratch ---
    cat_ref,         # (B, SLAB_W)    fused-matmul operand assembly buffer
    seq_ref,         # (B, L, H)      lang_seq buffer (instr with row 0 replaced)
):
    instr = instr_ref[...]
    cand = cand_ref[...]
    B, L, H = instr.shape
    C, Dp = cand.shape[1], cand.shape[2]

    # --- packed parameter slab segments (all starts are multiples of 8 sublanes) ---
    vecs = p_ref[0:_N_VEC, :]                               # (11, H)

    def vrow(i):
        return vecs[i:i + 1, :]                             # (1, H), broadcasts on (..., H)

    r0 = VEC_PAD
    w_sa = p_ref[r0:r0 + SLAB_W, :]                         # (SLAB_W, H) fused asp weight
    w_img = p_ref[r0 + SLAB_W:r0 + SLAB_W + Dp, :]          # (D_pad, H)
    w_sp = p_ref[r0 + SLAB_W + Dp:r0 + 2 * SLAB_W + Dp, :]  # (SLAB_W, H) fused state_proj

    lang_mask = small_ref[:, mask_off:mask_off + L]         # (B, L)
    vis_mask = small_ref[:, mask_off + L:mask_off + L + C]  # (B, C)

    # ---- 1) state/action fusion: single fused Linear + Tanh + BertLayerNorm ------------
    # cat = [state_tok | action_feats | *]; unused lanes hit zero weight rows -> exact.
    cat_ref[...] = small_ref[...]              # action_feats already at lanes [H:H+angle]
    cat_ref[:, 0:H] = instr[:, 0, :]           # state token at lanes [0:H]
    swa = jnp.tanh(
        jnp.dot(cat_ref[...], w_sa, preferred_element_type=jnp.float32) + vrow(_B_ASP))
    swa = _layer_norm(swa, vrow(_W_ALN), vrow(_B_ALN))      # (B, H)

    # state_feats = cat(swa.unsqueeze(1), instr[:, 1:, :]) -> overwrite row 0 in scratch
    seq_ref[...] = instr
    seq_ref[:, 0:1, :] = swa[:, None, :]
    lang_seq = seq_ref[...]                                  # (B, L, H)

    # ---- 2) env / angle split + dropout(eval -> identity) + re-concat: no-op -----------

    # ---- 3) surrogate VLN-BERT 'visual' pass --------------------------------------------
    # candidate (image) embedding: batched contraction over the last axis + BertLayerNorm
    # TODO(synk): for B>=64 replace the per-batch weight broadcast with a (B*C, D) 2-D dot.
    w_img_b = jnp.broadcast_to(w_img[None, :, :], (B, Dp, H))
    img = jnp.einsum('bcd,bdh->bch', cand, w_img_b,
                     preferred_element_type=jnp.float32) + vrow(_B_IMG)
    img = _layer_norm(img, vrow(_W_CLN), vrow(_B_CLN))       # (B, C, H)

    q = swa                                                   # state query (B, H)
    scale = 1.0 / (float(H) ** 0.5)
    q_b = q[:, None, :]

    # broadcast-multiply + reduce (VPU + XLU) instead of per-batch 1xH MXU einsums
    lang_scores = jnp.sum(q_b * lang_seq, axis=-1) * scale    # (B, L)
    lang_probs, _ = _masked_softmax(lang_scores, lang_mask)
    attended_language = jnp.sum(lang_probs[:, :, None] * lang_seq, axis=1)   # (B, H)

    vis_scores = jnp.sum(q_b * img, axis=-1) * scale          # (B, C)
    vis_probs, masked_vis = _masked_softmax(vis_scores, vis_mask)
    attended_visual = jnp.sum(vis_probs[:, :, None] * img, axis=1)           # (B, H)

    h_t = swa                  # surrogate recurrent state token
    logit = masked_vis         # (B, C) masked candidate scores

    # ---- 4) vis*lang fusion + single fused state projection -----------------------------
    vis_lang_feat = _layer_norm(attended_language * attended_visual,
                                vrow(_W_VLLN), vrow(_B_VLLN))
    cat_ref[:, 0:H] = h_t
    cat_ref[:, H:2 * H] = vis_lang_feat        # lanes [2H:] hit zero weight rows -> exact
    sp = jnp.dot(cat_ref[...], w_sp, preferred_element_type=jnp.float32) + vrow(_B_SP)
    sp = _layer_norm(sp, vrow(_W_SLN), vrow(_B_SLN))

    # ---- single lane-dense output slab: one unmasked writeback DMA ----------------------
    out_ref[...] = jnp.zeros_like(out_ref)
    out_ref[:, 0:H] = sp.astype(out_ref.dtype)
    out_ref[:, H:H + C] = logit.astype(out_ref.dtype)


def init_params(key, hidden, angle, img_dim):
    """Deterministic synthetic parameters (shapes match the nn.Module __init__)."""
    ks = jax.random.split(key, 3)
    ones = lambda: jnp.ones((1, hidden), jnp.float32)
    zeros = lambda: jnp.zeros((1, hidden), jnp.float32)
    return {
        # action_state_project: Linear(hidden + angle, hidden) [+ Tanh]
        "w_asp": 0.05 * jax.random.normal(ks[0], (hidden + angle, hidden), jnp.float32),
        "b_asp": zeros(),
        "w_aln": ones(), "b_aln": zeros(),          # action_LayerNorm
        # img_projection: Linear(img_feature_dim, hidden)
        "w_img": 0.05 * jax.random.normal(ks[1], (img_dim, hidden), jnp.float32),
        "b_img": zeros(),
        "w_cln": ones(), "b_cln": zeros(),          # cand_LayerNorm
        "w_vlln": ones(), "b_vlln": zeros(),        # vis_lang_LayerNorm
        # state_proj: Linear(2*hidden, hidden)
        "w_sp": 0.05 * jax.random.normal(ks[2], (2 * hidden, hidden), jnp.float32),
        "b_sp": zeros(),
        "w_sln": ones(), "b_sln": zeros(),          # state_LayerNorm
    }


def pack_params(params, hidden, angle, img_dim):
    """Pack ALL parameters into ONE 8-aligned (rows, hidden) slab.  Call ONCE at init
    (outside any jitted step) so no per-call concatenation/padding hits the hot path."""
    assert hidden + angle <= SLAB_W and 2 * hidden <= SLAB_W, "config too large for slab"
    d_pad = _round_up(img_dim, 8)

    # fused action_state_project weight: rows [0:H]=state, [H:H+angle]=action, rest 0
    w_sa = jnp.zeros((SLAB_W, hidden), jnp.float32)
    w_sa = w_sa.at[:hidden].set(params["w_asp"][:hidden])
    w_sa = w_sa.at[hidden:hidden + angle].set(params["w_asp"][hidden:])

    w_img = jnp.pad(params["w_img"], ((0, d_pad - img_dim), (0, 0)))

    # fused state_proj weight: rows [0:H]=h_t, [H:2H]=vis_lang, rest 0
    w_sp = jnp.zeros((SLAB_W, hidden), jnp.float32)
    w_sp = w_sp.at[:hidden].set(params["w_sp"][:hidden])
    w_sp = w_sp.at[hidden:2 * hidden].set(params["w_sp"][hidden:])

    vecs = jnp.concatenate([
        params["b_asp"], params["w_aln"], params["b_aln"],
        params["b_img"], params["w_cln"], params["b_cln"],
        params["w_vlln"], params["b_vlln"],
        params["b_sp"], params["w_sln"], params["b_sln"],
    ], axis=0)                                              # (11, H)
    vecs = jnp.pad(vecs, ((0, VEC_PAD - _N_VEC), (0, 0)))   # (VEC_PAD, H)

    return jnp.concatenate([vecs, w_sa, w_img, w_sp], axis=0)


def vlnbert_forward(packed_params, instruction_features, attention_mask, lang_mask,
                    vis_mask, cand_feats, action_feats):
    del attention_mask  # combined mask is consumed inside the pretrained VLN-BERT only
    B, L, H = instruction_features.shape
    C, img_dim = cand_feats.shape[1], cand_feats.shape[2]
    angle = action_feats.shape[1]
    d_pad = _round_up(img_dim, 8)
    mask_off = _round_up(H + angle, 8)
    assert mask_off + L + C <= SLAB_W and 2 * H <= SLAB_W, "config too large for slab"
    assert H + C <= OUT_W, "config too large for output slab"

    # layout plumbing only (tiny activation-side ops; zeros, exact result):
    cand_p = jnp.pad(cand_feats, ((0, 0), (0, 0), (0, d_pad - img_dim)))
    small = jnp.zeros((B, SLAB_W), jnp.float32)
    small = small.at[:, H:H + angle].set(action_feats)
    small = small.at[:, mask_off:mask_off + L].set(lang_mask.astype(jnp.float32))
    small = small.at[:, mask_off + L:mask_off + L + C].set(vis_mask.astype(jnp.float32))

    vmem = lambda: pl.BlockSpec(memory_space=pltpu.MemorySpace.VMEM)
    out = pl.pallas_call(
        functools.partial(vlnbert_kernel, mask_off),
        out_shape=jax.ShapeDtypeStruct((B, OUT_W), jnp.float32),
        in_specs=[vmem(), vmem(), vmem(), vmem()],
        out_specs=vmem(),
        scratch_shapes=[
            pltpu.VMEM((B, SLAB_W), jnp.float32),   # fused-matmul operand buffer
            pltpu.VMEM((B, L, H), jnp.float32),     # lang_seq buffer
        ],
    )(instruction_features, cand_p, small, packed_params)

    state_proj = out[:, :H]
    logit = out[:, H:H + C]
    return state_proj, logit


def _reference_forward(params, instruction_features, lang_mask, vis_mask,
                       cand_feats, action_feats):
    """Pure-JAX reference of the same surrogate forward (for a correctness check)."""
    H = instruction_features.shape[-1]

    def ln(x, w, b):
        u = x.mean(-1, keepdims=True)
        s = ((x - u) ** 2).mean(-1, keepdims=True)
        return w * (x - u) / jnp.sqrt(s + LN_EPS) + b

    sae = jnp.concatenate([instruction_features[:, 0, :], action_feats], 1)
    swa = ln(jnp.tanh(sae @ params["w_asp"] + params["b_asp"]),
             params["w_aln"], params["b_aln"])
    lang_seq = jnp.concatenate([swa[:, None, :], instruction_features[:, 1:, :]], 1)
    img = ln(cand_feats @ params["w_img"] + params["b_img"],
             params["w_cln"], params["b_cln"])
    scale = 1.0 / jnp.sqrt(jnp.float32(H))
    ls = jnp.where(lang_mask > 0, jnp.einsum('bh,blh->bl', swa, lang_seq) * scale, -1e9)
    al = jnp.einsum('bl,blh->bh', jax.nn.softmax(ls, -1), lang_seq)
    vs = jnp.where(vis_mask > 0, jnp.einsum('bh,bch->bc', swa, img) * scale, -1e9)
    av = jnp.einsum('bc,bch->bh', jax.nn.softmax(vs, -1), img)
    vl = ln(al * av, params["w_vlln"], params["b_vlln"])
    sp = ln(jnp.concatenate([swa, vl], -1) @ params["w_sp"] + params["b_sp"],
            params["w_sln"], params["b_sln"])
    return sp, vs


if __name__ == "__main__":
    # Small synthetic config consistent with the module:
    #   hidden_size=32, angle_feature_size=4, img_feature_dim=36 (env 32 + angle 4),
    #   seq len L=8, candidates C=6, batch B=2.
    B, L, H = 2, 8, 32
    ANGLE = 4
    IMG_DIM = 36
    C = 6

    key = jax.random.PRNGKey(0)
    k_instr, k_cand, k_act, k_params = jax.random.split(key, 4)

    instruction_features = jax.random.normal(k_instr, (B, L, H), jnp.float32)
    cand_feats = jax.random.normal(k_cand, (B, C, IMG_DIM), jnp.float32)
    action_feats = jax.random.normal(k_act, (B, ANGLE), jnp.float32)

    lang_mask = jnp.ones((B, L), jnp.float32).at[:, L - 2:].set(0.0)
    vis_mask = jnp.ones((B, C), jnp.float32).at[1, C - 1:].set(0.0)
    attention_mask = jnp.concatenate([lang_mask, vis_mask], axis=1)

    params = init_params(k_params, H, ANGLE, IMG_DIM)
    # Pack parameters ONCE outside the jitted per-call path; pass as an explicit jit arg.
    packed_params = pack_params(params, H, ANGLE, IMG_DIM)

    fwd = jax.jit(vlnbert_forward)
    state_proj, logit = fwd(packed_params, instruction_features, attention_mask,
                            lang_mask, vis_mask, cand_feats, action_feats)
    jax.block_until_ready((state_proj, logit))

    assert state_proj.shape == (B, H) and logit.shape == (B, C)
    assert jnp.all(jnp.isfinite(state_proj)) and jnp.all(jnp.isfinite(logit))

    # correctness check against the pure-JAX reference (exact softmax -> tight tolerance)
    ref_sp, ref_logit = _reference_forward(params, instruction_features, lang_mask,
                                           vis_mask, cand_feats, action_feats)
    assert jnp.allclose(state_proj, ref_sp, atol=1e-4, rtol=1e-4)
    assert jnp.allclose(logit, ref_logit, atol=1e-4, rtol=1e-4)

    print("KERNEL_OK")
</pallas_src>

<mosaic_0001>
module attributes {stable_mosaic.version = 11 : i64} {
  func.func @vlnbert_kernel(%arg0: memref<2x8x32xf32, #tpu.memory_space<vmem>>, %arg1: memref<2x6x40xf32, #tpu.memory_space<vmem>>, %arg2: memref<2x128xf32, #tpu.memory_space<vmem>>, %arg3: memref<312x32xf32, #tpu.memory_space<vmem>>, %arg4: memref<2x128xf32, #tpu.memory_space<vmem>>, %arg5: memref<2x128xf32, #tpu.memory_space<vmem>>, %arg6: memref<2x8x32xf32, #tpu.memory_space<vmem>>) attributes {dimension_semantics = [], scalar_prefetch = 0 : i64, scratch_operands = 2 : i64, tpu.core_type = #tpu.core_type<tc>} {
    %c0 = arith.constant 0 : index
    %c0_0 = arith.constant 0 : index
    %c0_1 = arith.constant 0 : index
    %0 = vector.load %arg0[%c0, %c0_0, %c0_1] : memref<2x8x32xf32, #tpu.memory_space<vmem>>, vector<2x8x32xf32>
    %c0_2 = arith.constant 0 : index
    %c0_3 = arith.constant 0 : index
    %c0_4 = arith.constant 0 : index
    %1 = vector.load %arg1[%c0_2, %c0_3, %c0_4] : memref<2x6x40xf32, #tpu.memory_space<vmem>>, vector<2x6x40xf32>
    %c0_5 = arith.constant 0 : index
    %c0_6 = arith.constant 0 : index
    %2 = vector.load %arg3[%c0_5, %c0_6] : memref<312x32xf32, #tpu.memory_space<vmem>>, vector<11x32xf32>
    %c16 = arith.constant 16 : index
    %c0_7 = arith.constant 0 : index
    %3 = vector.load %arg3[%c16, %c0_7] : memref<312x32xf32, #tpu.memory_space<vmem>>, vector<128x32xf32>
    %c144 = arith.constant 144 : index
    %c0_8 = arith.constant 0 : index
    %4 = vector.load %arg3[%c144, %c0_8] : memref<312x32xf32, #tpu.memory_space<vmem>>, vector<40x32xf32>
    %c184 = arith.constant 184 : index
    %c0_9 = arith.constant 0 : index
    %5 = vector.load %arg3[%c184, %c0_9] : memref<312x32xf32, #tpu.memory_space<vmem>>, vector<128x32xf32>
    %c0_10 = arith.constant 0 : index
    %c40 = arith.constant 40 : index
    %6 = vector.load %arg2[%c0_10, %c40] : memref<2x128xf32, #tpu.memory_space<vmem>>, vector<2x8xf32>
    %c0_11 = arith.constant 0 : index
    %c48 = arith.constant 48 : index
    %7 = vector.load %arg2[%c0_11, %c48] : memref<2x128xf32, #tpu.memory_space<vmem>>, vector<2x6xf32>
    %c0_12 = arith.constant 0 : index
    %c0_13 = arith.constant 0 : index
    %8 = vector.load %arg2[%c0_12, %c0_13] : memref<2x128xf32, #tpu.memory_space<vmem>>, vector<2x128xf32>
    %c0_14 = arith.constant 0 : index
    %c0_15 = arith.constant 0 : index
    %9 = vector.load %arg5[%c0_14, %c0_15] : memref<2x128xf32, #tpu.memory_space<vmem>>, vector<2x128xf32>
    tpu.vector_store %arg5[%c0_14, %c0_15], %8 {strides = array<i32>} : memref<2x128xf32, #tpu.memory_space<vmem>>, vector<2x128xf32>,
    %10 = vector.extract_strided_slice %0 {offsets = [0, 0, 0], sizes = [2, 1, 32], strides = [1, 1, 1]} : vector<2x8x32xf32> to vector<2x1x32xf32>
    %11 = vector.shape_cast %10 : vector<2x1x32xf32> to vector<2x32xf32>
    %c0_16 = arith.constant 0 : index
    %c0_17 = arith.constant 0 : index
    %12 = vector.load %arg5[%c0_16, %c0_17] : memref<2x128xf32, #tpu.memory_space<vmem>>, vector<2x32xf32>
    tpu.vector_store %arg5[%c0_16, %c0_17], %11 {strides = array<i32>} : memref<2x128xf32, #tpu.memory_space<vmem>>, vector<2x32xf32>,
    %c0_18 = arith.constant 0 : index
    %c0_19 = arith.constant 0 : index
    %13 = vector.load %arg5[%c0_18, %c0_19] : memref<2x128xf32, #tpu.memory_space<vmem>>, vector<2x128xf32>
    %cst = arith.constant dense<0.000000e+00> : vector<2x32xf32>
    %14 = tpu.matmul %13, %3, %cst {dimension_numbers = #tpu.dot_dimension_numbers<[1], [0], [0], [1], [0, 0, 1, 1], [], []>} : vector<2x128xf32>, vector<128x32xf32>, vector<2x32xf32> -> vector<2x32xf32>
    %15 = vector.extract_strided_slice %2 {offsets = [0, 0], sizes = [1, 32], strides = [1, 1]} : vector<11x32xf32> to vector<1x32xf32>
    %16 = vector.broadcast %15 : vector<1x32xf32> to vector<2x32xf32>
    %17 = arith.addf %14, %16 : vector<2x32xf32>
    %18 = math.tanh %17 : vector<2x32xf32>
    %19 = vector.extract_strided_slice %2 {offsets = [1, 0], sizes = [1, 32], strides = [1, 1]} : vector<11x32xf32> to vector<1x32xf32>
    %20 = vector.extract_strided_slice %2 {offsets = [2, 0], sizes = [1, 32], strides = [1, 1]} : vector<11x32xf32> to vector<1x32xf32>
    %cst_20 = arith.constant dense<0.000000e+00> : vector<2xf32>
    %21 = vector.multi_reduction <add>, %18, %cst_20 [1] : vector<2x32xf32> to vector<2xf32>
    %22 = vector.shape_cast %21 : vector<2xf32> to vector<2x1xf32>
    %cst_21 = arith.constant 3.200000e+01 : f32
    %23 = vector.broadcast %cst_21 : f32 to vector<2x1xf32>
    %24 = arith.divf %22, %23 : vector<2x1xf32>
    %25 = vector.broadcast %24 : vector<2x1xf32> to vector<2x32xf32>
    %26 = arith.subf %18, %25 : vector<2x32xf32>
    %27 = arith.mulf %26, %26 : vector<2x32xf32>
    %cst_22 = arith.constant dense<0.000000e+00> : vector<2xf32>
    %28 = vector.multi_reduction <add>, %27, %cst_22 [1] : vector<2x32xf32> to vector<2xf32>
    %29 = vector.shape_cast %28 : vector<2xf32> to vector<2x1xf32>
    %cst_23 = arith.constant 3.200000e+01 : f32
    %30 = vector.broadcast %cst_23 : f32 to vector<2x1xf32>
    %31 = arith.divf %29, %30 : vector<2x1xf32>
    %cst_24 = arith.constant 9.99999996E-13 : f32
    %32 = vector.broadcast %cst_24 : f32 to vector<2x1xf32>
    %33 = arith.addf %31, %32 : vector<2x1xf32>
    %34 = math.rsqrt %33 : vector<2x1xf32>
    %35 = vector.broadcast %34 : vector<2x1xf32> to vector<2x32xf32>
    %36 = arith.mulf %26, %35 : vector<2x32xf32>
    %37 = vector.broadcast %19 : vector<1x32xf32> to vector<2x32xf32>
    %38 = arith.mulf %37, %36 : vector<2x32xf32>
    %39 = vector.broadcast %20 : vector<1x32xf32> to vector<2x32xf32>
    %40 = arith.addf %38, %39 : vector<2x32xf32>
    %c0_25 = arith.constant 0 : index
    %c0_26 = arith.constant 0 : index
    %c0_27 = arith.constant 0 : index
    %41 = vector.load %arg6[%c0_25, %c0_26, %c0_27] : memref<2x8x32xf32, #tpu.memory_space<vmem>>, vector<2x8x32xf32>
    tpu.vector_store %arg6[%c0_25, %c0_26, %c0_27], %0 {strides = array<i32>} : memref<2x8x32xf32, #tpu.memory_space<vmem>>, vector<2x8x32xf32>,
    %42 = vector.shape_cast %40 : vector<2x32xf32> to vector<2x1x32xf32>
    %c0_28 = arith.constant 0 : index
    %c0_29 = arith.constant 0 : index
    %c0_30 = arith.constant 0 : index
    %43 = vector.load %arg6[%c0_28, %c0_29, %c0_30] : memref<2x8x32xf32, #tpu.memory_space<vmem>>, vector<2x1x32xf32>
    tpu.vector_store %arg6[%c0_28, %c0_29, %c0_30], %42 {strides = array<i32>} : memref<2x8x32xf32, #tpu.memory_space<vmem>>, vector<2x1x32xf32>,
    %c0_31 = arith.constant 0 : index
    %c0_32 = arith.constant 0 : index
    %c0_33 = arith.constant 0 : index
    %44 = vector.load %arg6[%c0_31, %c0_32, %c0_33] : memref<2x8x32xf32, #tpu.memory_space<vmem>>, vector<2x8x32xf32>
    %45 = vector.shape_cast %4 : vector<40x32xf32> to vector<1x40x32xf32>
    %46 = vector.shape_cast %45 : vector<1x40x32xf32> to vector<1x40x32xf32>
    %47 = vector.broadcast %46 : vector<1x40x32xf32> to vector<2x40x32xf32>
    "tpu.trace_start"() <{level = 10 : i32, message = "bcd,bdh->bch"}> : () -> ()
    %cst_34 = arith.constant dense<0.000000e+00> : vector<2x6x32xf32>
    %48 = tpu.matmul %1, %47, %cst_34 {dimension_numbers = #tpu.dot_dimension_numbers<[2], [1], [1], [2], [0, 0, 0, 1, 1, 2], [0], [0]>} : vector<2x6x40xf32>, vector<2x40x32xf32>, vector<2x6x32xf32> -> vector<2x6x32xf32>
    "tpu.trace_stop"() : () -> ()
    %49 = vector.extract_strided_slice %2 {offsets = [3, 0], sizes = [1, 32], strides = [1, 1]} : vector<11x32xf32> to vector<1x32xf32>
    %50 = vector.shape_cast %49 : vector<1x32xf32> to vector<1x1x32xf32>
    %51 = vector.broadcast %50 : vector<1x1x32xf32> to vector<2x6x32xf32>
    %52 = arith.addf %48, %51 : vector<2x6x32xf32>
    %53 = vector.extract_strided_slice %2 {offsets = [4, 0], sizes = [1, 32], strides = [1, 1]} : vector<11x32xf32> to vector<1x32xf32>
    %54 = vector.extract_strided_slice %2 {offsets = [5, 0], sizes = [1, 32], strides = [1, 1]} : vector<11x32xf32> to vector<1x32xf32>
    %cst_35 = arith.constant dense<0.000000e+00> : vector<2x6xf32>
    %55 = vector.multi_reduction <add>, %52, %cst_35 [2] : vector<2x6x32xf32> to vector<2x6xf32>
    %56 = vector.shape_cast %55 : vector<2x6xf32> to vector<2x6x1xf32>
    %cst_36 = arith.constant 3.200000e+01 : f32
    %57 = vector.broadcast %cst_36 : f32 to vector<2x6x1xf32>
    %58 = arith.divf %56, %57 : vector<2x6x1xf32>
    %59 = vector.broadcast %58 : vector<2x6x1xf32> to vector<2x6x32xf32>
    %60 = arith.subf %52, %59 : vector<2x6x32xf32>
    %61 = arith.mulf %60, %60 : vector<2x6x32xf32>
    %cst_37 = arith.constant dense<0.000000e+00> : vector<2x6xf32>
    %62 = vector.multi_reduction <add>, %61, %cst_37 [2] : vector<2x6x32xf32> to vector<2x6xf32>
    %63 = vector.shape_cast %62 : vector<2x6xf32> to vector<2x6x1xf32>
    %cst_38 = arith.constant 3.200000e+01 : f32
    %64 = vector.broadcast %cst_38 : f32 to vector<2x6x1xf32>
    %65 = arith.divf %63, %64 : vector<2x6x1xf32>
    %cst_39 = arith.constant 9.99999996E-13 : f32
    %66 = vector.broadcast %cst_39 : f32 to vector<2x6x1xf32>
    %67 = arith.addf %65, %66 : vector<2x6x1xf32>
    %68 = math.rsqrt %67 : vector<2x6x1xf32>
    %69 = vector.broadcast %68 : vector<2x6x1xf32> to vector<2x6x32xf32>
    %70 = arith.mulf %60, %69 : vector<2x6x32xf32>
    %71 = vector.shape_cast %53 : vector<1x32xf32> to vector<1x1x32xf32>
    %72 = vector.broadcast %71 : vector<1x1x32xf32> to vector<2x6x32xf32>
    %73 = arith.mulf %72, %70 : vector<2x6x32xf32>
    %74 = vector.shape_cast %54 : vector<1x32xf32> to vector<1x1x32xf32>
    %75 = vector.broadcast %74 : vector<1x1x32xf32> to vector<2x6x32xf32>
    %76 = arith.addf %73, %75 : vector<2x6x32xf32>
    %77 = vector.shape_cast %40 : vector<2x32xf32> to vector<2x1x32xf32>
    %78 = vector.broadcast %77 : vector<2x1x32xf32> to vector<2x8x32xf32>
    %79 = arith.mulf %78, %44 : vector<2x8x32xf32>
    %cst_40 = arith.constant dense<0.000000e+00> : vector<2x8xf32>
    %80 = vector.multi_reduction <add>, %79, %cst_40 [2] : vector<2x8x32xf32> to vector<2x8xf32>
    %cst_41 = arith.constant 0.176776692 : f32
    %81 = vector.broadcast %cst_41 : f32 to vector<2x8xf32>
    %82 = arith.mulf %80, %81 : vector<2x8xf32>
    %cst_42 = arith.constant 0.000000e+00 : f32
    %83 = vector.broadcast %cst_42 : f32 to vector<2x8xf32>
    %84 = arith.cmpf ogt, %6, %83 : vector<2x8xf32>
    %cst_43 = arith.constant -1.000000e+09 : f32
    %85 = vector.broadcast %cst_43 : f32 to vector<2x8xf32>
    %86 = arith.select %84, %82, %85 : vector<2x8xi1>, vector<2x8xf32>
    %cst_44 = arith.constant dense<0xFF800000> : vector<2xf32>
    %87 = vector.multi_reduction <maximumf>, %86, %cst_44 [1] : vector<2x8xf32> to vector<2xf32>
    %88 = vector.shape_cast %87 : vector<2xf32> to vector<2x1xf32>
    %89 = vector.broadcast %88 : vector<2x1xf32> to vector<2x8xf32>
    %90 = arith.subf %86, %89 : vector<2x8xf32>
    %91 = math.exp %90 : vector<2x8xf32>
    %cst_45 = arith.constant dense<0.000000e+00> : vector<2xf32>
    %92 = vector.multi_reduction <add>, %91, %cst_45 [1] : vector<2x8xf32> to vector<2xf32>
    %93 = vector.shape_cast %92 : vector<2xf32> to vector<2x1xf32>
    %94 = vector.broadcast %93 : vector<2x1xf32> to vector<2x8xf32>
    %95 = arith.divf %91, %94 : vector<2x8xf32>
    %96 = vector.shape_cast %95 : vector<2x8xf32> to vector<2x8x1xf32>
    %97 = vector.broadcast %96 : vector<2x8x1xf32> to vector<2x8x32xf32>
    %98 = arith.mulf %97, %44 : vector<2x8x32xf32>
    %cst_46 = arith.constant dense<0.000000e+00> : vector<2x32xf32>
    %99 = vector.multi_reduction <add>, %98, %cst_46 [1] : vector<2x8x32xf32> to vector<2x32xf32>
    %100 = vector.broadcast %77 : vector<2x1x32xf32> to vector<2x6x32xf32>
    %101 = arith.mulf %100, %76 : vector<2x6x32xf32>
    %cst_47 = arith.constant dense<0.000000e+00> : vector<2x6xf32>
    %102 = vector.multi_reduction <add>, %101, %cst_47 [2] : vector<2x6x32xf32> to vector<2x6xf32>
    %cst_48 = arith.constant 0.176776692 : f32
    %103 = vector.broadcast %cst_48 : f32 to vector<2x6xf32>
    %104 = arith.mulf %102, %103 : vector<2x6xf32>
    %cst_49 = arith.constant 0.000000e+00 : f32
    %105 = vector.broadcast %cst_49 : f32 to vector<2x6xf32>
    %106 = arith.cmpf ogt, %7, %105 : vector<2x6xf32>
    %cst_50 = arith.constant -1.000000e+09 : f32
    %107 = vector.broadcast %cst_50 : f32 to vector<2x6xf32>
    %108 = arith.select %106, %104, %107 : vector<2x6xi1>, vector<2x6xf32>
    %cst_51 = arith.constant dense<0xFF800000> : vector<2xf32>
    %109 = vector.multi_reduction <maximumf>, %108, %cst_51 [1] : vector<2x6xf32> to vector<2xf32>
    %110 = vector.shape_cast %109 : vector<2xf32> to vector<2x1xf32>
    %111 = vector.broadcast %110 : vector<2x1xf32> to vector<2x6xf32>
    %112 = arith.subf %108, %111 : vector<2x6xf32>
    %113 = math.exp %112 : vector<2x6xf32>
    %cst_52 = arith.constant dense<0.000000e+00> : vector<2xf32>
    %114 = vector.multi_reduction <add>, %113, %cst_52 [1] : vector<2x6xf32> to vector<2xf32>
    %115 = vector.shape_cast %114 : vector<2xf32> to vector<2x1xf32>
    %116 = vector.broadcast %115 : vector<2x1xf32> to vector<2x6xf32>
    %117 = arith.divf %113, %116 : vector<2x6xf32>
    %118 = vector.shape_cast %117 : vector<2x6xf32> to vector<2x6x1xf32>
    %119 = vector.broadcast %118 : vector<2x6x1xf32> to vector<2x6x32xf32>
    %120 = arith.mulf %119, %76 : vector<2x6x32xf32>
    %cst_53 = arith.constant dense<0.000000e+00> : vector<2x32xf32>
    %121 = vector.multi_reduction <add>, %120, %cst_53 [1] : vector<2x6x32xf32> to vector<2x32xf32>
    %122 = arith.mulf %99, %121 : vector<2x32xf32>
    %123 = vector.extract_strided_slice %2 {offsets = [6, 0], sizes = [1, 32], strides = [1, 1]} : vector<11x32xf32> to vector<1x32xf32>
    %124 = vector.extract_strided_slice %2 {offsets = [7, 0], sizes = [1, 32], strides = [1, 1]} : vector<11x32xf32> to vector<1x32xf32>
    %cst_54 = arith.constant dense<0.000000e+00> : vector<2xf32>
    %125 = vector.multi_reduction <add>, %122, %cst_54 [1] : vector<2x32xf32> to vector<2xf32>
    %126 = vector.shape_cast %125 : vector<2xf32> to vector<2x1xf32>
    %cst_55 = arith.constant 3.200000e+01 : f32
    %127 = vector.broadcast %cst_55 : f32 to vector<2x1xf32>
    %128 = arith.divf %126, %127 : vector<2x1xf32>
    %129 = vector.broadcast %128 : vector<2x1xf32> to vector<2x32xf32>
    %130 = arith.subf %122, %129 : vector<2x32xf32>
    %131 = arith.mulf %130, %130 : vector<2x32xf32>
    %cst_56 = arith.constant dense<0.000000e+00> : vector<2xf32>
    %132 = vector.multi_reduction <add>, %131, %cst_56 [1] : vector<2x32xf32> to vector<2xf32>
    %133 = vector.shape_cast %132 : vector<2xf32> to vector<2x1xf32>
    %cst_57 = arith.constant 3.200000e+01 : f32
    %134 = vector.broadcast %cst_57 : f32 to vector<2x1xf32>
    %135 = arith.divf %133, %134 : vector<2x1xf32>
    %cst_58 = arith.constant 9.99999996E-13 : f32
    %136 = vector.broadcast %cst_58 : f32 to vector<2x1xf32>
    %137 = arith.addf %135, %136 : vector<2x1xf32>
    %138 = math.rsqrt %137 : vector<2x1xf32>
    %139 = vector.broadcast %138 : vector<2x1xf32> to vector<2x32xf32>
    %140 = arith.mulf %130, %139 : vector<2x32xf32>
    %141 = vector.broadcast %123 : vector<1x32xf32> to vector<2x32xf32>
    %142 = arith.mulf %141, %140 : vector<2x32xf32>
    %143 = vector.broadcast %124 : vector<1x32xf32> to vector<2x32xf32>
    %144 = arith.addf %142, %143 : vector<2x32xf32>
    %c0_59 = arith.constant 0 : index
    %c0_60 = arith.constant 0 : index
    %145 = vector.load %arg5[%c0_59, %c0_60] : memref<2x128xf32, #tpu.memory_space<vmem>>, vector<2x32xf32>
    tpu.vector_store %arg5[%c0_59, %c0_60], %40 {strides = array<i32>} : memref<2x128xf32, #tpu.memory_space<vmem>>, vector<2x32xf32>,
    %c0_61 = arith.constant 0 : index
    %c32 = arith.constant 32 : index
    %146 = vector.load %arg5[%c0_61, %c32] : memref<2x128xf32, #tpu.memory_space<vmem>>, vector<2x32xf32>
    tpu.vector_store %arg5[%c0_61, %c32], %144 {strides = array<i32>} : memref<2x128xf32, #tpu.memory_space<vmem>>, vector<2x32xf32>,
    %c0_62 = arith.constant 0 : index
    %c0_63 = arith.constant 0 : index
    %147 = vector.load %arg5[%c0_62, %c0_63] : memref<2x128xf32, #tpu.memory_space<vmem>>, vector<2x128xf32>
    %cst_64 = arith.constant dense<0.000000e+00> : vector<2x32xf32>
    %148 = tpu.matmul %147, %5, %cst_64 {dimension_numbers = #tpu.dot_dimension_numbers<[1], [0], [0], [1], [0, 0, 1, 1], [], []>} : vector<2x128xf32>, vector<128x32xf32>, vector<2x32xf32> -> vector<2x32xf32>
    %149 = vector.extract_strided_slice %2 {offsets = [8, 0], sizes = [1, 32], strides = [1, 1]} : vector<11x32xf32> to vector<1x32xf32>
    %150 = vector.broadcast %149 : vector<1x32xf32> to vector<2x32xf32>
    %151 = arith.addf %148, %150 : vector<2x32xf32>
    %152 = vector.extract_strided_slice %2 {offsets = [9, 0], sizes = [1, 32], strides = [1, 1]} : vector<11x32xf32> to vector<1x32xf32>
    %153 = vector.extract_strided_slice %2 {offsets = [10, 0], sizes = [1, 32], strides = [1, 1]} : vector<11x32xf32> to vector<1x32xf32>
    %cst_65 = arith.constant dense<0.000000e+00> : vector<2xf32>
    %154 = vector.multi_reduction <add>, %151, %cst_65 [1] : vector<2x32xf32> to vector<2xf32>
    %155 = vector.shape_cast %154 : vector<2xf32> to vector<2x1xf32>
    %cst_66 = arith.constant 3.200000e+01 : f32
    %156 = vector.broadcast %cst_66 : f32 to vector<2x1xf32>
    %157 = arith.divf %155, %156 : vector<2x1xf32>
    %158 = vector.broadcast %157 : vector<2x1xf32> to vector<2x32xf32>
    %159 = arith.subf %151, %158 : vector<2x32xf32>
    %160 = arith.mulf %159, %159 : vector<2x32xf32>
    %cst_67 = arith.constant dense<0.000000e+00> : vector<2xf32>
    %161 = vector.multi_reduction <add>, %160, %cst_67 [1] : vector<2x32xf32> to vector<2xf32>
    %162 = vector.shape_cast %161 : vector<2xf32> to vector<2x1xf32>
    %cst_68 = arith.constant 3.200000e+01 : f32
    %163 = vector.broadcast %cst_68 : f32 to vector<2x1xf32>
    %164 = arith.divf %162, %163 : vector<2x1xf32>
    %cst_69 = arith.constant 9.99999996E-13 : f32
    %165 = vector.broadcast %cst_69 : f32 to vector<2x1xf32>
    %166 = arith.addf %164, %165 : vector<2x1xf32>
    %167 = math.rsqrt %166 : vector<2x1xf32>
    %168 = vector.broadcast %167 : vector<2x1xf32> to vector<2x32xf32>
    %169 = arith.mulf %159, %168 : vector<2x32xf32>
    %170 = vector.broadcast %152 : vector<1x32xf32> to vector<2x32xf32>
    %171 = arith.mulf %170, %169 : vector<2x32xf32>
    %172 = vector.broadcast %153 : vector<1x32xf32> to vector<2x32xf32>
    %173 = arith.addf %171, %172 : vector<2x32xf32>
    %cst_70 = arith.constant 0.000000e+00 : f32
    %174 = vector.broadcast %cst_70 : f32 to vector<2x128xf32>
    %c0_71 = arith.constant 0 : index
    %c0_72 = arith.constant 0 : index
    %175 = vector.load %arg4[%c0_71, %c0_72] : memref<2x128xf32, #tpu.memory_space<vmem>>, vector<2x128xf32>
    tpu.vector_store %arg4[%c0_71, %c0_72], %174 {strides = array<i32>} : memref<2x128xf32, #tpu.memory_space<vmem>>, vector<2x128xf32>,
    %c0_73 = arith.constant 0 : index
    %c0_74 = arith.constant 0 : index
    %176 = vector.load %arg4[%c0_73, %c0_74] : memref<2x128xf32, #tpu.memory_space<vmem>>, vector<2x32xf32>
    tpu.vector_store %arg4[%c0_73, %c0_74], %173 {strides = array<i32>} : memref<2x128xf32, #tpu.memory_space<vmem>>, vector<2x32xf32>,
    %c0_75 = arith.constant 0 : index
    %c32_76 = arith.constant 32 : index
    %177 = vector.load %arg4[%c0_75, %c32_76] : memref<2x128xf32, #tpu.memory_space<vmem>>, vector<2x6xf32>
    tpu.vector_store %arg4[%c0_75, %c32_76], %108 {strides = array<i32>} : memref<2x128xf32, #tpu.memory_space<vmem>>, vector<2x6xf32>,
    return
  }
}

</mosaic_0001>

<llo_original>
// kernel: vlnbert_forward.1
$region0: #{vlnbert_forward.1}
  #allocation0 [shape = 'u32[]', space=smem, size = 0x4, offset = 0x4, fixed_abs, tag = 'smem constant byte address 0x4 - core index']
  #allocation1 [shape = 'u32[144,128]{1,0:T(1,128)}', space=vmem, size = 0x12000, scoped, tag = 'internal scratch']
  #allocation2 [shape = 'f32[2,128]{1,0:T(2,128)}', space=vmem, size = 0x400, scoped, tag = 'scratch operand']
  #allocation3 [shape = 'f32[2,8,32]{2,1,0:T(8,128)}', space=vmem, size = 0x2000, scoped, tag = 'scratch operand']
  %s0 = inlined_call_operand.vmem [shape: f32[2,8,32], index: 0, kind: input, shape index: {}]
  %s1 = inlined_call_operand.vmem [shape: f32[2,6,40], index: 1, kind: input, shape index: {}]
  %s2 = inlined_call_operand.vmem [shape: f32[2,128], index: 2, kind: input, shape index: {}]
  %s3 = inlined_call_operand.vmem [shape: f32[312,32], index: 3, kind: input, shape index: {}]
  %s4 = inlined_call_operand.vmem [shape: f32[2,128], index: 4, kind: output, shape index: {}]
  %s5 = sld [smem:[#allocation0]]
  $region26: #{vlnbert_forward.1} parent=0
    _
  %s7 = ssub.s32 1, %s5
  %s8 = scalar_select 0, %s7, %s5
  // Predicated region
  $region2: #{vlnbert_forward.1} parent=0 // pred_check
    _
  $region3: #{vlnbert_forward.1} parent=0 // pred_check_branch
    %10 = sbr.rel (0) target = $region5
  $region4: #{vlnbert_forward.1} parent=0 // pred_region
    _
  $region5: #{vlnbert_forward.1} parent=0 // pred_fallthru
    _
  // Predicated region
  $region6: #{vlnbert_forward.1} parent=0 // pred_check
    _
  $region7: #{vlnbert_forward.1} parent=0 // pred_check_branch
    %12 = sbr.rel (0) target = $region9
  $region8: #{vlnbert_forward.1} parent=0 // pred_region
    _
  $region9: #{vlnbert_forward.1} parent=0 // pred_fallthru
    _
  // Predicated region
  $region10: #{vlnbert_forward.1} parent=0 // pred_check
    _
  $region11: #{vlnbert_forward.1} parent=0 // pred_check_branch
    %14 = sbr.rel (0) target = $region13
  $region12: #{vlnbert_forward.1} parent=0 // pred_region
    _
  $region13: #{vlnbert_forward.1} parent=0 // pred_fallthru
    _
  // Predicated region
  $region14: #{vlnbert_forward.1} parent=0 // pred_check
    _
  $region15: #{vlnbert_forward.1} parent=0 // pred_check_branch
    %16 = sbr.rel (0) target = $region17
  $region16: #{vlnbert_forward.1} parent=0 // pred_region
    _
  $region17: #{vlnbert_forward.1} parent=0 // pred_fallthru
    _
  %v17 = vld [vmem:[%s0] sm:$0xff]
  %v18 = vld [vmem:[%s0 + $0x8] sm:$0xff]
  %v19 = vld [vmem:[%s1] sm:$0x3f]
  %v20 = vld [vmem:[%s1 + $0x8] sm:$0x3f]
  %v21 = vld [vmem:[%s3] sm:$0xff]
  %v22 = vld [vmem:[%s3 + $0x8] sm:$0x7]
  %v23 = vld [vmem:[%s3 + $0x10] sm:$0xff]
  %v24 = vld [vmem:[%s3 + $0x18] sm:$0xff]
  %v25 = vld [vmem:[%s3 + $0x20] sm:$0xff]
  %v26 = vld [vmem:[%s3 + $0x28] sm:$0xff]
  %v27 = vld [vmem:[%s3 + $0x30] sm:$0xff]
  %v28 = vld [vmem:[%s3 + $0x38] sm:$0xff]
  %v29 = vld [vmem:[%s3 + $0x40] sm:$0xff]
  %v30 = vld [vmem:[%s3 + $0x48] sm:$0xff]
  %v31 = vld [vmem:[%s3 + $0x50] sm:$0xff]
  %v32 = vld [vmem:[%s3 + $0x58] sm:$0xff]
  %v33 = vld [vmem:[%s3 + $0x60] sm:$0xff]
  %v34 = vld [vmem:[%s3 + $0x68] sm:$0xff]
  %v35 = vld [vmem:[%s3 + $0x70] sm:$0xff]
  %v36 = vld [vmem:[%s3 + $0x78] sm:$0xff]
  %v37 = vld [vmem:[%s3 + $0x80] sm:$0xff]
  %v38 = vld [vmem:[%s3 + $0x88] sm:$0xff]
  %v39 = vld [vmem:[%s3 + $0x90] sm:$0xff]
  %v40 = vld [vmem:[%s3 + $0x98] sm:$0xff]
  %v41 = vld [vmem:[%s3 + $0xa0] sm:$0xff]
  %v42 = vld [vmem:[%s3 + $0xa8] sm:$0xff]
  %v43 = vld [vmem:[%s3 + $0xb0] sm:$0xff]
  %v44 = vld [vmem:[%s3 + $0xb8] sm:$0xff]
  %v45 = vld [vmem:[%s3 + $0xc0] sm:$0xff]
  %v46 = vld [vmem:[%s3 + $0xc8] sm:$0xff]
  %v47 = vld [vmem:[%s3 + $0xd0] sm:$0xff]
  %v48 = vld [vmem:[%s3 + $0xd8] sm:$0xff]
  %v49 = vld [vmem:[%s3 + $0xe0] sm:$0xff]
  %v50 = vld [vmem:[%s3 + $0xe8] sm:$0xff]
  %v51 = vld [vmem:[%s3 + $0xf0] sm:$0xff]
  %v52 = vld [vmem:[%s3 + $0xf8] sm:$0xff]
  %v53 = vld [vmem:[%s3 + $0x100] sm:$0xff]
  %v54 = vld [vmem:[%s3 + $0x108] sm:$0xff]
  %v55 = vld [vmem:[%s3 + $0x110] sm:$0xff]
  %v56 = vld [vmem:[%s3 + $0x118] sm:$0xff]
  %v57 = vld [vmem:[%s3 + $0x120] sm:$0xff]
  %v58 = vld [vmem:[%s3 + $0x128] sm:$0xff]
  %v59 = vld [vmem:[%s3 + $0x130] sm:$0xff]
  %v60 = vld [vmem:[%s2] sm:$0x3]
  %61 = vst [vmem:[#allocation2] sm:$0x3] %v60
  %v64 = vrot.slane %v18, 7
  %vm65 = vcmask 1041409
  %v66 = vsel %vm65, %v64, %v17
  %vm68 = vcmask 254976
  %69 = vst.msk [vmem:[#allocation2] sm:$0x3] %vm68, %v66
  %v70 = vld [vmem:[#allocation2] sm:$0x3]
  %v71 = vlaneseq
  %v72 = vshrl.u32 %v71, 7
  %v73 = vsub.s32 0, %v72
  %v74 = vrot.slane %v21, %v73
  %75 = vmatprep.subr.mxu0 0.0
  %76 = vmatpush1.msra.mxu0 %v23
  %77 = vmatprep.subr.mxu0 0.0
  %78 = vmatpush1.msra.mxu0 %v24
  %79 = vmatprep.subr.mxu0 0.0
  %80 = vmatpush1.msra.mxu0 %v25
  %81 = vmatprep.subr.mxu0 0.0
  %82 = vmatpush1.msra.mxu0 %v26
  %83 = vmatprep.subr.mxu0 0.0
  %84 = vmatpush1.msra.mxu0 %v27
  %85 = vmatprep.subr.mxu0 0.0
  %86 = vmatpush1.msra.mxu0 %v28
  %87 = vmatprep.subr.mxu0 0.0
  %88 = vmatpush1.msra.mxu0 %v29
  %89 = vmatprep.subr.mxu0 0.0
  %90 = vmatpush1.msra.mxu0 %v30
  %91 = vmatprep.subr.mxu0 0.0
  %92 = vmatpush1.msra.mxu0 %v31
  %93 = vmatprep.subr.mxu0 0.0
  %94 = vmatpush1.msra.mxu0 %v32
  %95 = vmatprep.subr.mxu0 0.0
  %96 = vmatpush1.msra.mxu0 %v33
  %97 = vmatprep.subr.mxu0 0.0
  %98 = vmatpush1.msra.mxu0 %v34
  %99 = vmatprep.subr.mxu0 0.0
  %100 = vmatpush1.msra.mxu0 %v35
  %101 = vmatprep.subr.mxu0 0.0
  %102 = vmatpush1.msra.mxu0 %v36
  %103 = vmatprep.subr.mxu0 0.0
  %104 = vmatpush1.msra.mxu0 %v37
  %105 = vmatprep.subr.mxu0 0.0
  %106 = vmatpush1.msra.mxu0 %v38
  %107 = vmatprep.subr.mxu0 0.0
  %108 = vmatpush1.msra.mxu0 0.0
  %109 = vmatprep.subr.mxu0 0.0
  %110 = vmatpush1.msra.mxu0 0.0
  %111 = vmatprep.subr.mxu0 0.0
  %112 = vmatpush1.msra.mxu0 0.0
  %113 = vmatprep.subr.mxu0 0.0
  %114 = vmatpush1.msra.mxu0 0.0
  %115 = vmatprep.subr.mxu0 0.0
  %116 = vmatpush1.msra.mxu0 0.0
  %117 = vmatprep.subr.mxu0 0.0
  %118 = vmatpush1.msra.mxu0 0.0
  %119 = vmatprep.subr.mxu0 0.0
  %120 = vmatpush1.msra.mxu0 0.0
  %121 = vmatprep.subr.mxu0 0.0
  %122 = vmatpush1.msra.mxu0 0.0
  %123 = vmatprep.subr.mxu0 0.0
  %124 = vmatpush1.msra.mxu0 0.0
  %125 = vmatprep.subr.mxu0 0.0
  %126 = vmatpush1.msra.mxu0 0.0
  %127 = vmatprep.subr.mxu0 0.0
  %128 = vmatpush1.msra.mxu0 0.0
  %129 = vmatprep.subr.mxu0 0.0
  %130 = vmatpush1.msra.mxu0 0.0
  %131 = vmatprep.subr.mxu0 0.0
  %132 = vmatpush1.msra.mxu0 0.0
  %133 = vmatprep.subr.mxu0 0.0
  %134 = vmatpush1.msra.mxu0 0.0
  %135 = vmatprep.subr.mxu0 0.0
  %136 = vmatpush1.msra.mxu0 0.0
  %137 = vmatprep.subr.mxu0 0.0
  %138 = vmatpush1.msra.mxu0 0.0
  %139 = vmatprep.mubr.f32.mxu0 0.0
  %140 = vmatmul.mubr.f32.gmra.mrb[0].mxu0 %v70
  %v141 = vpop.f32.mrb[0].mxu0
  %v142 = vadd.f32 %v74, %v141
  %v143 = vpop.f32.mrb[0].mxu0
  %144 = vdwg.mxu0
  %v145 = vtanh.pop %v142
  %v146 = vsel %vm68, %v145, 0.0
  %147 = vadd.xlane.f32.xlu0 %v146
  %v148 = vpop.xlane.xlu0 %147
  %v149 = vrcp.pop 32.0
  %v150 = vmul.f32 %v148, %v149
  %v151 = vsub.f32 %v145, %v150
  %v152 = vmul.f32 %v151, %v151
  %v153 = vsel %vm68, %v152, 0.0
  %154 = vadd.xlane.f32.xlu0 %v153
  %v155 = vpop.xlane.xlu0 %154
  %v156 = vmul.f32 %v155, %v149
  %v157 = vadd.f32 %v156, 1e-12
  %v158 = vrsqrt.pop %v157
  %v159 = vmul.f32 %v151, %v158
  %v160 = vlaneseq
  %v161 = vshrl.u32 %v160, 7
  %v162 = vsub.s32 1, %v161
  %v163 = vrot.slane %v21, %v162
  %v164 = vmul.f32 %v163, %v159
  %v165 = vlaneseq
  %v166 = vshrl.u32 %v165, 7
  %v167 = vsub.s32 2, %v166
  %v168 = vrot.slane %v21, %v167
  %v169 = vadd.f32 %v164, %v168
  %vm170 = vcmask 261120
  %171 = vst.msk [vmem:[#allocation3] sm:$0xff] %vm170, %v17
  %172 = vst.msk [vmem:[#allocation3 + $0x8] sm:$0xff] %vm170, %v18
  %v175 = vunpack.c.l.s4 1966171168
  %v176 = vunpack.c.0.s8 %v175
  %v177 = vlaneseq
  %v178 = vshrl.u32 %v177, 7
  %v179 = vsub.s32 %v176, %v178
  %v180 = vrot.slane %v169, %v179
  %v181 = vcombine.high %v180, %v180
  %v183 = vunpack.c.l.s4 1966171168
  %v184 = vunpack.c.0.s8 %v183
  %v185 = vlaneseq
  %v186 = vshrl.u32 %v185, 7
  %v187 = vsub.s32 %v184, %v186
  %v188 = vrot.slane %v180, %v187
  %v190 = vunpack.c.l.s4 1966171168
  %v191 = vunpack.c.0.s8 %v190
  %v192 = vlaneseq
  %v193 = vshrl.u32 %v192, 7
  %v194 = vsub.s32 %v191, %v193
  %v195 = vrot.slane %v181, %v194
  %vm198 = vcmask 253952
  %199 = vst.msk [vmem:[#allocation3] sm:$0x1] %vm198, %v188
  %200 = vst.msk [vmem:[#allocation3 + $0x8] sm:$0x1] %vm198, %v195
  %v201 = vld [vmem:[#allocation3] sm:$0xff]
  %v202 = vld [vmem:[#allocation3 + $0x8] sm:$0xff]
  %v203 = vlaneseq
  %v204 = vshrl.u32 %v203, 7
  %v205 = vsub.s32 3, %v204
  %v206 = vrot.slane %v21, %v205
  %vm207 = vcmask 326656
  %v209 = vsel %vm207, %v19, 0
  %211 = vmatprep.subr.mxu0 0.0
  %212 = vmatpush1.msra.mxu0 %v39
  %213 = vmatprep.subr.mxu0 0.0
  %214 = vmatpush1.msra.mxu0 %v40
  %215 = vmatprep.subr.mxu0 0.0
  %216 = vmatpush1.msra.mxu0 %v41
  %217 = vmatprep.subr.mxu0 0.0
  %218 = vmatpush1.msra.mxu0 %v42
  %219 = vmatprep.subr.mxu0 0.0
  %220 = vmatpush1.msra.mxu0 %v43
  %221 = vmatprep.subr.mxu0 0.0
  %222 = vmatpush1.msra.mxu0 0.0
  %223 = vmatprep.subr.mxu0 0.0
  %224 = vmatpush1.msra.mxu0 0.0
  %225 = vmatprep.subr.mxu0 0.0
  %226 = vmatpush1.msra.mxu0 0.0
  %227 = vmatprep.subr.mxu0 0.0
  %228 = vmatpush1.msra.mxu0 0.0
  %229 = vmatprep.subr.mxu0 0.0
  %230 = vmatpush1.msra.mxu0 0.0
  %231 = vmatprep.subr.mxu0 0.0
  %232 = vmatpush1.msra.mxu0 0.0
  %233 = vmatprep.subr.mxu0 0.0
  %234 = vmatpush1.msra.mxu0 0.0
  %235 = vmatprep.subr.mxu0 0.0
  %236 = vmatpush1.msra.mxu0 0.0
  %237 = vmatprep.subr.mxu0 0.0
  %238 = vmatpush1.msra.mxu0 0.0
  %239 = vmatprep.subr.mxu0 0.0
  %240 = vmatpush1.msra.mxu0 0.0
  %241 = vmatprep.subr.mxu0 0.0
  %242 = vmatpush1.msra.mxu0 0.0
  %243 = vmatprep.subr.mxu0 0.0
  %244 = vmatpush1.msra.mxu0 0.0
  %245 = vmatprep.subr.mxu0 0.0
  %246 = vmatpush1.msra.mxu0 0.0
  %247 = vmatprep.subr.mxu0 0.0
  %248 = vmatpush1.msra.mxu0 0.0
  %249 = vmatprep.subr.mxu0 0.0
  %250 = vmatpush1.msra.mxu0 0.0
  %251 = vmatprep.subr.mxu0 0.0
  %252 = vmatpush1.msra.mxu0 0.0
  %253 = vmatprep.subr.mxu0 0.0
  %254 = vmatpush1.msra.mxu0 0.0
  %255 = vmatprep.subr.mxu0 0.0
  %256 = vmatpush1.msra.mxu0 0.0
  %257 = vmatprep.subr.mxu0 0.0
  %258 = vmatpush1.msra.mxu0 0.0
  %259 = vmatprep.subr.mxu0 0.0
  %260 = vmatpush1.msra.mxu0 0.0
  %261 = vmatprep.subr.mxu0 0.0
  %262 = vmatpush1.msra.mxu0 0.0
  %263 = vmatprep.subr.mxu0 0.0
  %264 = vmatpush1.msra.mxu0 0.0
  %265 = vmatprep.subr.mxu0 0.0
  %266 = vmatpush1.msra.mxu0 0.0
  %267 = vmatprep.subr.mxu0 0.0
  %268 = vmatpush1.msra.mxu0 0.0
  %269 = vmatprep.subr.mxu0 0.0
  %270 = vmatpush1.msra.mxu0 0.0
  %271 = vmatprep.subr.mxu0 0.0
  %272 = vmatpush1.msra.mxu0 0.0
  %273 = vmatprep.subr.mxu0 0.0
  %274 = vmatpush1.msra.mxu0 0.0
  %275 = vmatprep.mubr.f32.mxu0 0.0
  %276 = vmatmul.mubr.f32.gmra.mrb[0].mxu0 %v209
  %v277 = vpop.f32.mrb[0].mxu0
  %v278 = vadd.f32 %v206, %v277
  %v279 = vpop.f32.mrb[0].mxu0
  %280 = vdwg.mxu0
  %v282 = vsel %vm207, %v20, 0
  %284 = vmatprep.subr.mxu0 0.0
  %285 = vmatpush1.msra.mxu0 %v39
  %286 = vmatprep.subr.mxu0 0.0
  %287 = vmatpush1.msra.mxu0 %v40
  %288 = vmatprep.subr.mxu0 0.0
  %289 = vmatpush1.msra.mxu0 %v41
  %290 = vmatprep.subr.mxu0 0.0
  %291 = vmatpush1.msra.mxu0 %v42
  %292 = vmatprep.subr.mxu0 0.0
  %293 = vmatpush1.msra.mxu0 %v43
  %294 = vmatprep.subr.mxu0 0.0
  %295 = vmatpush1.msra.mxu0 0.0
  %296 = vmatprep.subr.mxu0 0.0
  %297 = vmatpush1.msra.mxu0 0.0
  %298 = vmatprep.subr.mxu0 0.0
  %299 = vmatpush1.msra.mxu0 0.0
  %300 = vmatprep.subr.mxu0 0.0
  %301 = vmatpush1.msra.mxu0 0.0
  %302 = vmatprep.subr.mxu0 0.0
  %303 = vmatpush1.msra.mxu0 0.0
  %304 = vmatprep.subr.mxu0 0.0
  %305 = vmatpush1.msra.mxu0 0.0
  %306 = vmatprep.subr.mxu0 0.0
  %307 = vmatpush1.msra.mxu0 0.0
  %308 = vmatprep.subr.mxu0 0.0
  %309 = vmatpush1.msra.mxu0 0.0
  %310 = vmatprep.subr.mxu0 0.0
  %311 = vmatpush1.msra.mxu0 0.0
  %312 = vmatprep.subr.mxu0 0.0
  %313 = vmatpush1.msra.mxu0 0.0
  %314 = vmatprep.subr.mxu0 0.0
  %315 = vmatpush1.msra.mxu0 0.0
  %316 = vmatprep.subr.mxu0 0.0
  %317 = vmatpush1.msra.mxu0 0.0
  %318 = vmatprep.subr.mxu0 0.0
  %319 = vmatpush1.msra.mxu0 0.0
  %320 = vmatprep.subr.mxu0 0.0
  %321 = vmatpush1.msra.mxu0 0.0
  %322 = vmatprep.subr.mxu0 0.0
  %323 = vmatpush1.msra.mxu0 0.0
  %324 = vmatprep.subr.mxu0 0.0
  %325 = vmatpush1.msra.mxu0 0.0
  %326 = vmatprep.subr.mxu0 0.0
  %327 = vmatpush1.msra.mxu0 0.0
  %328 = vmatprep.subr.mxu0 0.0
  %329 = vmatpush1.msra.mxu0 0.0
  %330 = vmatprep.subr.mxu0 0.0
  %331 = vmatpush1.msra.mxu0 0.0
  %332 = vmatprep.subr.mxu0 0.0
  %333 = vmatpush1.msra.mxu0 0.0
  %334 = vmatprep.subr.mxu0 0.0
  %335 = vmatpush1.msra.mxu0 0.0
  %336 = vmatprep.subr.mxu0 0.0
  %337 = vmatpush1.msra.mxu0 0.0
  %338 = vmatprep.subr.mxu0 0.0
  %339 = vmatpush1.msra.mxu0 0.0
  %340 = vmatprep.subr.mxu0 0.0
  %341 = vmatpush1.msra.mxu0 0.0
  %342 = vmatprep.subr.mxu0 0.0
  %343 = vmatpush1.msra.mxu0 0.0
  %344 = vmatprep.subr.mxu0 0.0
  %345 = vmatpush1.msra.mxu0 0.0
  %346 = vmatprep.subr.mxu0 0.0
  %347 = vmatpush1.msra.mxu0 0.0
  %348 = vmatprep.mubr.f32.mxu0 0.0
  %349 = vmatmul.mubr.f32.gmra.mrb[0].mxu0 %v282
  %v350 = vpop.f32.mrb[0].mxu0
  %v351 = vadd.f32 %v206, %v350
  %v352 = vpop.f32.mrb[0].mxu0
  %353 = vdwg.mxu0
  %vm354 = vcmask 259072
  %v355 = vsel %vm354, %v278, 0.0
  %356 = vadd.xlane.f32.xlu0 %v355
  %v357 = vpop.xlane.xlu0 %356
  %v358 = vsel %vm354, %v351, 0.0
  %359 = vadd.xlane.f32.xlu0 %v358
  %v360 = vpop.xlane.xlu0 %359
  %v361 = vmul.f32 %v357, %v149
  %v362 = vmul.f32 %v360, %v149
  %v363 = vsub.f32 %v278, %v361
  %v364 = vsub.f32 %v351, %v362
  %v365 = vmul.f32 %v363, %v363
  %v366 = vmul.f32 %v364, %v364
  %v367 = vsel %vm354, %v365, 0.0
  %368 = vadd.xlane.f32.xlu0 %v367
  %v369 = vpop.xlane.xlu0 %368
  %v370 = vsel %vm354, %v366, 0.0
  %371 = vadd.xlane.f32.xlu0 %v370
  %v372 = vpop.xlane.xlu0 %371
  %v373 = vmul.f32 %v369, %v149
  %v374 = vmul.f32 %v372, %v149
  %v375 = vadd.f32 %v373, 1e-12
  %v376 = vadd.f32 %v374, 1e-12
  %v377 = vrsqrt.pop %v375
  %v378 = vrsqrt.pop %v376
  %v379 = vmul.f32 %v363, %v377
  %v380 = vmul.f32 %v364, %v378
  %v381 = vlaneseq
  %v382 = vshrl.u32 %v381, 7
  %v383 = vsub.s32 4, %v382
  %v384 = vrot.slane %v21, %v383
  %v385 = vmul.f32 %v384, %v379
  %v386 = vmul.f32 %v384, %v380
  %v387 = vlaneseq
  %v388 = vshrl.u32 %v387, 7
  %v389 = vsub.s32 5, %v388
  %v390 = vrot.slane %v21, %v389
  %v391 = vadd.f32 %v385, %v390
  %v392 = vadd.f32 %v386, %v390
  %v393 = vlaneseq
  %v394 = vshrl.u32 %v393, 7
  %v395 = vsub.s32 0, %v394
  %v396 = vrot.slane %v188, %v395
  %v397 = vlaneseq
  %v398 = vshrl.u32 %v397, 7
  %v399 = vsub.s32 0, %v398
  %v400 = vrot.slane %v195, %v399
  %v403 = vmul.f32 %v396, %v201
  %v404 = vmul.f32 %v400, %v202
  %v405 = vsel %vm170, %v403, 0.0
  %406 = vadd.xlane.f32.xlu0 %v405
  %v407 = vpop.xlane.xlu0 %406
  %v408 = vsel %vm170, %v404, 0.0
  %409 = vadd.xlane.f32.xlu0 %v408
  %v410 = vpop.xlane.xlu0 %409
  %v411 = vmul.f32 %v407, 0.17677669
  %v412 = vmul.f32 %v410, 0.17677669
  %vm413 = vcmp.gt.f32.partialorder %v60, 0.0
  %v416 = vlaneseq
  %v417 = vand.u32 %v416, 127
  %v418 = vadd.s32 %v417, 4294967256
  %v419 = vlaneseq
  %v420 = vshrl.u32 %v419, 7
  %v421 = vsub.s32 %v418, %v420
  %v422 = vrot.slane %v411, %v421
  %v423 = vlaneseq
  %v424 = vshrl.u32 %v423, 7
  %v425 = vsub.s32 %v418, %v424
  %v426 = vrot.slane %v412, %v425
  %v427 = vsel %vm65, %v426, %v422
  %v429 = vsel %vm413, %v427, -1e+09
  %vm430 = vcmask 386368
  %v431 = vsel %vm430, %v429, -inf
  %432 = vmax.xlane.f32.xlu0 %v431
  %v433 = vpop.xlane.xlu0 %432
  %v434 = vsub.f32 %v429, %v433
  %v435 = vmul.f32 %v434, 1.442695
  %v436 = vpow.pop %v435
  %438 = vrot.lane.b32.xlu0 %v436, 88
  %v439 = vpop.permute.xlu0 %438
  %vm441 = vcmask 58368
  %v442 = vsel %vm441, %v439, 0.0
  %443 = vadd.xlane.f32.xlu0 %v442
  %v444 = vpop.xlane.xlu0 %443
  %v445 = vrcp.pop %v444
  %v446 = vmul.f32 %v436, %v445
  %v447 = vlaneseq
  %v448 = vshrl.u32 %v447, 7
  %v449 = vsub.s32 0, %v448
  %v450 = vrot.slane %v446, %v449
  %s452 = sor.u32 256, 40
  %453 = vbcast.lane.b32.xlu0 %v450, %s452
  %v454 = vpop.permute.xlu0 %453
  %v455 = vlaneseq
  %v456 = vshrl.u32 %v455, 7
  %v457 = vsub.s32 1, %v456
  %v458 = vrot.slane %v446, %v457
  %s460 = sor.u32 256, 40
  %461 = vbcast.lane.b32.xlu0 %v458, %s460
  %v462 = vpop.permute.xlu0 %461
  %v463 = vmul.f32 %v454, %v201
  %v464 = vmul.f32 %v462, %v202
  %v465 = vsel %vm170, %v463, 0.0
  %v466 = vrot.slane %v465, 4
  %v467 = vadd.f32 %v465, %v466
  %v468 = vrot.slane %v467, 2
  %v469 = vadd.f32 %v467, %v468
  %v470 = vrot.slane %v469, 1
  %v471 = vadd.f32 %v469, %v470
  %v472 = vsel %vm170, %v464, 0.0
  %v473 = vrot.slane %v472, 4
  %v474 = vadd.f32 %v472, %v473
  %v475 = vrot.slane %v474, 2
  %v476 = vadd.f32 %v474, %v475
  %v477 = vrot.slane %v476, 1
  %v478 = vadd.f32 %v476, %v477
  %v479 = vmul.f32 %v396, %v391
  %v480 = vmul.f32 %v400, %v392
  %v481 = vsel %vm354, %v479, 0.0
  %482 = vadd.xlane.f32.xlu0 %v481
  %v483 = vpop.xlane.xlu0 %482
  %v484 = vsel %vm354, %v480, 0.0
  %485 = vadd.xlane.f32.xlu0 %v484
  %v486 = vpop.xlane.xlu0 %485
  %v487 = vmul.f32 %v483, 0.17677669
  %v488 = vmul.f32 %v486, 0.17677669
  %v491 = vadd.s32 %v417, 4294967248
  %v492 = vlaneseq
  %v493 = vshrl.u32 %v492, 7
  %v494 = vsub.s32 %v491, %v493
  %v495 = vrot.slane %v487, %v494
  %v496 = vlaneseq
  %v497 = vshrl.u32 %v496, 7
  %v498 = vsub.s32 %v491, %v497
  %v499 = vrot.slane %v488, %v498
  %v500 = vsel %vm65, %v499, %v495
  %v502 = vsel %vm413, %v500, -1e+09
  %vm503 = vcmask 435584
  %v504 = vsel %vm503, %v502, -inf
  %505 = vmax.xlane.f32.xlu0 %v504
  %v506 = vpop.xlane.xlu0 %505
  %v507 = vsub.f32 %v502, %v506
  %v508 = vmul.f32 %v507, 1.442695
  %v509 = vpow.pop %v508
  %511 = vrot.lane.b32.xlu0 %v509, 80
  %v512 = vpop.permute.xlu0 %511
  %vm514 = vcmask 41984
  %v515 = vsel %vm514, %v512, 0.0
  %516 = vadd.xlane.f32.xlu0 %v515
  %v517 = vpop.xlane.xlu0 %516
  %v518 = vrcp.pop %v517
  %v519 = vmul.f32 %v509, %v518
  %v520 = vlaneseq
  %v521 = vshrl.u32 %v520, 7
  %v522 = vsub.s32 0, %v521
  %v523 = vrot.slane %v519, %v522
  %s525 = sor.u32 256, 48
  %526 = vbcast.lane.b32.xlu0 %v523, %s525
  %v527 = vpop.permute.xlu0 %526
  %v528 = vlaneseq
  %v529 = vshrl.u32 %v528, 7
  %v530 = vsub.s32 1, %v529
  %v531 = vrot.slane %v519, %v530
  %s533 = sor.u32 256, 48
  %534 = vbcast.lane.b32.xlu0 %v531, %s533
  %v535 = vpop.permute.xlu0 %534
  %v536 = vmul.f32 %v527, %v391
  %v537 = vmul.f32 %v535, %v392
  %v538 = vsel %vm354, %v536, 0.0
  %v539 = vrot.slane %v538, 4
  %v540 = vadd.f32 %v538, %v539
  %v541 = vrot.slane %v540, 2
  %v542 = vadd.f32 %v540, %v541
  %v543 = vrot.slane %v542, 1
  %v544 = vadd.f32 %v542, %v543
  %v545 = vsel %vm354, %v537, 0.0
  %v546 = vrot.slane %v545, 4
  %v547 = vadd.f32 %v545, %v546
  %v548 = vrot.slane %v547, 2
  %v549 = vadd.f32 %v547, %v548
  %v550 = vrot.slane %v549, 1
  %v551 = vadd.f32 %v549, %v550
  %v552 = vmul.f32 %v471, %v544
  %v553 = vmul.f32 %v478, %v551
  %v556 = vsel %vm65, %v553, %v552
  %v558 = vsel %vm68, %v556, 0.0
  %559 = vadd.xlane.f32.xlu0 %v558
  %v560 = vpop.xlane.xlu0 %559
  %v561 = vmul.f32 %v560, %v149
  %v563 = vrot.slane %v561, 1
  %v566 = vsub.f32 %v552, %v561
  %v567 = vsub.f32 %v553, %v563
  %v568 = vmul.f32 %v566, %v566
  %v569 = vmul.f32 %v567, %v567
  %v572 = vrot.slane %v569, 7
  %v573 = vsel %vm65, %v572, %v568
  %v575 = vsel %vm68, %v573, 0.0
  %576 = vadd.xlane.f32.xlu0 %v575
  %v577 = vpop.xlane.xlu0 %576
  %v578 = vmul.f32 %v577, %v149
  %v579 = vadd.f32 %v578, 1e-12
  %v580 = vrsqrt.pop %v579
  %v582 = vrot.slane %v580, 1
  %v585 = vmul.f32 %v566, %v580
  %v586 = vmul.f32 %v567, %v582
  %v587 = vlaneseq
  %v588 = vshrl.u32 %v587, 7
  %v589 = vsub.s32 6, %v588
  %v590 = vrot.slane %v21, %v589
  %v593 = vrot.slane %v586, 7
  %v594 = vsel %vm65, %v593, %v585
  %v596 = vmul.f32 %v590, %v594
  %v597 = vlaneseq
  %v598 = vshrl.u32 %v597, 7
  %v599 = vsub.s32 7, %v598
  %v600 = vrot.slane %v21, %v599
  %v601 = vadd.f32 %v596, %v600
  %602 = vst.msk [vmem:[#allocation2] sm:$0x3] %vm68, %v169
  %604 = vrot.lane.b32.xlu0 %v601, 32
  %v605 = vpop.permute.xlu0 %604
  %vm607 = vcmask 517376
  %608 = vst.msk [vmem:[#allocation2] sm:$0x3] %vm607, %v605
  %v609 = vld [vmem:[#allocation2] sm:$0x3]
  %v610 = vlaneseq
  %v611 = vshrl.u32 %v610, 7
  %v612 = vsub.s32 0, %v611
  %v613 = vrot.slane %v22, %v612
  %614 = vmatprep.subr.mxu0 0.0
  %615 = vmatpush1.msra.mxu0 %v44
  %616 = vmatprep.subr.mxu0 0.0
  %617 = vmatpush1.msra.mxu0 %v45
  %618 = vmatprep.subr.mxu0 0.0
  %619 = vmatpush1.msra.mxu0 %v46
  %620 = vmatprep.subr.mxu0 0.0
  %621 = vmatpush1.msra.mxu0 %v47
  %622 = vmatprep.subr.mxu0 0.0
  %623 = vmatpush1.msra.mxu0 %v48
  %624 = vmatprep.subr.mxu0 0.0
  %625 = vmatpush1.msra.mxu0 %v49
  %626 = vmatprep.subr.mxu0 0.0
  %627 = vmatpush1.msra.mxu0 %v50
  %628 = vmatprep.subr.mxu0 0.0
  %629 = vmatpush1.msra.mxu0 %v51
  %630 = vmatprep.subr.mxu0 0.0
  %631 = vmatpush1.msra.mxu0 %v52
  %632 = vmatprep.subr.mxu0 0.0
  %633 = vmatpush1.msra.mxu0 %v53
  %634 = vmatprep.subr.mxu0 0.0
  %635 = vmatpush1.msra.mxu0 %v54
  %636 = vmatprep.subr.mxu0 0.0
  %637 = vmatpush1.msra.mxu0 %v55
  %638 = vmatprep.subr.mxu0 0.0
  %639 = vmatpush1.msra.mxu0 %v56
  %640 = vmatprep.subr.mxu0 0.0
  %641 = vmatpush1.msra.mxu0 %v57
  %642 = vmatprep.subr.mxu0 0.0
  %643 = vmatpush1.msra.mxu0 %v58
  %644 = vmatprep.subr.mxu0 0.0
  %645 = vmatpush1.msra.mxu0 %v59
  %646 = vmatprep.subr.mxu0 0.0
  %647 = vmatpush1.msra.mxu0 0.0
  %648 = vmatprep.subr.mxu0 0.0
  %649 = vmatpush1.msra.mxu0 0.0
  %650 = vmatprep.subr.mxu0 0.0
  %651 = vmatpush1.msra.mxu0 0.0
  %652 = vmatprep.subr.mxu0 0.0
  %653 = vmatpush1.msra.mxu0 0.0
  %654 = vmatprep.subr.mxu0 0.0
  %655 = vmatpush1.msra.mxu0 0.0
  %656 = vmatprep.subr.mxu0 0.0
  %657 = vmatpush1.msra.mxu0 0.0
  %658 = vmatprep.subr.mxu0 0.0
  %659 = vmatpush1.msra.mxu0 0.0
  %660 = vmatprep.subr.mxu0 0.0
  %661 = vmatpush1.msra.mxu0 0.0
  %662 = vmatprep.subr.mxu0 0.0
  %663 = vmatpush1.msra.mxu0 0.0
  %664 = vmatprep.subr.mxu0 0.0
  %665 = vmatpush1.msra.mxu0 0.0
  %666 = vmatprep.subr.mxu0 0.0
  %667 = vmatpush1.msra.mxu0 0.0
  %668 = vmatprep.subr.mxu0 0.0
  %669 = vmatpush1.msra.mxu0 0.0
  %670 = vmatprep.subr.mxu0 0.0
  %671 = vmatpush1.msra.mxu0 0.0
  %672 = vmatprep.subr.mxu0 0.0
  %673 = vmatpush1.msra.mxu0 0.0
  %674 = vmatprep.subr.mxu0 0.0
  %675 = vmatpush1.msra.mxu0 0.0
  %676 = vmatprep.subr.mxu0 0.0
  %677 = vmatpush1.msra.mxu0 0.0
  %678 = vmatprep.mubr.f32.mxu0 0.0
  %679 = vmatmul.mubr.f32.gmra.mrb[0].mxu0 %v609
  %v680 = vpop.f32.mrb[0].mxu0
  %v681 = vadd.f32 %v613, %v680
  %v682 = vpop.f32.mrb[0].mxu0
  %683 = vdwg.mxu0
  %v684 = vsel %vm68, %v681, 0.0
  %685 = vadd.xlane.f32.xlu0 %v684
  %v686 = vpop.xlane.xlu0 %685
  %v687 = vmul.f32 %v686, %v149
  %v688 = vsub.f32 %v681, %v687
  %v689 = vmul.f32 %v688, %v688
  %v690 = vsel %vm68, %v689, 0.0
  %691 = vadd.xlane.f32.xlu0 %v690
  %v692 = vpop.xlane.xlu0 %691
  %v693 = vmul.f32 %v692, %v149
  %v694 = vadd.f32 %v693, 1e-12
  %v695 = vrsqrt.pop %v694
  %v696 = vmul.f32 %v688, %v695
  %v697 = vlaneseq
  %v698 = vshrl.u32 %v697, 7
  %v699 = vsub.s32 1, %v698
  %v700 = vrot.slane %v22, %v699
  %v701 = vmul.f32 %v700, %v696
  %v702 = vlaneseq
  %v703 = vshrl.u32 %v702, 7
  %v704 = vsub.s32 2, %v703
  %v705 = vrot.slane %v22, %v704
  %v706 = vadd.f32 %v701, %v705
  %707 = vst [vmem:[%s4] sm:$0x3] 0.0
  %708 = vst.msk [vmem:[%s4] sm:$0x3] %vm68, %v706
  %710 = vrot.lane.b32.xlu0 %v502, 112
  %v711 = vpop.permute.xlu0 %710
  %vm713 = vcmask 304384
  %714 = vst.msk [vmem:[%s4] sm:$0x3] %vm713, %v711
  // Predicated region
  $region18: #{vlnbert_forward.1} parent=0 // pred_check
    _
  $region19: #{vlnbert_forward.1} parent=0 // pred_check_branch
    %716 = sbr.rel (0) target = $region21
  $region20: #{vlnbert_forward.1} parent=0 // pred_region
    _
  $region21: #{vlnbert_forward.1} parent=0 // pred_fallthru
    _
  // Predicated region
  $region22: #{vlnbert_forward.1} parent=0 // pred_check
    _
  $region23: #{vlnbert_forward.1} parent=0 // pred_check_branch
    %718 = sbr.rel (0) target = $region25
  $region24: #{vlnbert_forward.1} parent=0 // pred_region
    _
  $region25: #{vlnbert_forward.1} parent=0 // pred_fallthru
    _

</llo_original>
